<compile_context>
chip_gen: v7x
topology: tpu7x:2x2x1
jax: 0.10.0
libtpu: 0.0.40
codegen_flags: <defaults>
</compile_context>

<pallas_src>
import jax
import jax.numpy as jnp
from jax.experimental import pallas as pl
from jax.experimental.pallas import tpu as pltpu


def _round_up(v, m):
    return (v + m - 1) // m * m


_VMEM_CAP_CACHE = [None]


def _vmem_capacity_bytes():
    """Per-core VMEM capacity; falls back to the v7x (smallest) value."""
    if _VMEM_CAP_CACHE[0] is None:
        try:
            _VMEM_CAP_CACHE[0] = int(pltpu.get_tpu_info().vmem_capacity_bytes)
        except Exception:
            _VMEM_CAP_CACHE[0] = 64 << 20   # conservative (v7x per-TC VMEM)
    return _VMEM_CAP_CACHE[0]


# ------------------------------ fused kernel --------------------------------

def _mlp4_kernel(x_ref, w1_ref, b1_ref, w2_ref, b2_ref, w3_ref, b3_ref,
                 w4_ref, b4_ref, feat_ref, logits_ref):
    # fc1 + ReLU
    h = jnp.dot(x_ref[...], w1_ref[...], preferred_element_type=jnp.float32)
    h = jnp.maximum(h + b1_ref[...], 0.0)
    # fc2 + ReLU
    h = jnp.dot(h.astype(w2_ref.dtype), w2_ref[...],
                preferred_element_type=jnp.float32)
    h = jnp.maximum(h + b2_ref[...], 0.0)
    # fc3 + ReLU   (= before_logits)
    h = jnp.dot(h.astype(w3_ref.dtype), w3_ref[...],
                preferred_element_type=jnp.float32)
    h = jnp.maximum(h + b3_ref[...], 0.0)
    feat_ref[...] = h.astype(feat_ref.dtype)
    # fc4 (logits, no activation)
    y = jnp.dot(h.astype(w4_ref.dtype), w4_ref[...],
                preferred_element_type=jnp.float32)
    logits_ref[...] = (y + b4_ref[...]).astype(logits_ref.dtype)


# ------------------------------ params --------------------------------------

def init_params(key, in_dims, hid_dims, num_classes):
    """PyTorch nn.Linear default init; weights stored [in, out] (y = x @ W + b)."""
    ks = jax.random.split(key, 4)

    def lin(k, din, dout):
        kw, kb = jax.random.split(k)
        scale = 1.0 / jnp.sqrt(jnp.float32(din))
        w = jax.random.uniform(kw, (din, dout), jnp.float32, -scale, scale)
        b = jax.random.uniform(kb, (dout,), jnp.float32, -scale, scale)
        return w, b

    return {
        "fc1": lin(ks[0], in_dims, hid_dims),
        "fc2": lin(ks[1], hid_dims, hid_dims),
        "fc3": lin(ks[2], hid_dims, hid_dims),
        "fc4": lin(ks[3], hid_dims, num_classes),
    }


def prepare_params(params):
    """Pad weights/biases to lane-dense (multiple-of-128) shapes and cast the
    weights to bf16 ONCE, outside the per-forward hot path.

    Zero padding is exact: padded input columns meet zero weight rows, and
    padded hidden units have zero weight+bias, so ReLU(0)=0 contributes
    nothing downstream.
    """
    w1, b1 = params["fc1"]
    w2, b2 = params["fc2"]
    w3, b3 = params["fc3"]
    w4, b4 = params["fc4"]

    din, hid = w1.shape
    ncls = w4.shape[1]
    din_p = _round_up(din, 128)
    h_p = _round_up(hid, 128)
    c_p = _round_up(ncls, 128)

    def pad_w(w, r, c):
        return jnp.pad(w, ((0, r - w.shape[0]),
                           (0, c - w.shape[1]))).astype(jnp.bfloat16)

    def pad_b(b, c):
        return jnp.pad(b, (0, c - b.shape[0])).astype(jnp.float32)[None, :]

    return {
        "dims": (din, hid, ncls),
        "pdims": (din_p, h_p, c_p),
        "tensors": (
            pad_w(w1, din_p, h_p), pad_b(b1, h_p),
            pad_w(w2, h_p, h_p), pad_b(b2, h_p),
            pad_w(w3, h_p, h_p), pad_b(b3, h_p),
            pad_w(w4, h_p, c_p), pad_b(b4, c_p),
        ),
    }


# ------------------------------ tile selection -------------------------------

def _pick_tm(B, din_p, h_p, c_p, vmem_bytes):
    """Batch tile rows: VMEM-budgeted, <=1024, multiple of 16, and whenever
    B > 32 split into >= 2 grid steps (v7x megacore + DMA/compute overlap)."""
    # Resident weight set: single-buffered bf16 weights + f32 biases.
    w_bytes = 2 * (din_p * h_p + 2 * h_p * h_p + h_p * c_p) \
        + 4 * (3 * h_p + c_p)
    # Per batch row: x tile (bf16, double-buffered) + both f32 output tiles
    # (double-buffered).
    per_row = 2 * (2 * din_p) + 2 * (4 * h_p + 4 * c_p)
    budget = int(0.6 * vmem_bytes) - w_bytes
    tm_cap = max(16, min(1024, (budget // per_row) // 16 * 16))

    if B <= 32:
        return max(16, _round_up(B, 16))
    # grid >= 2 so the "parallel" batch axis shards across both v7x cores and
    # Pallas can overlap the next tile's DMA with the current tile's compute.
    return min(tm_cap, _round_up(pl.cdiv(B, 2), 16))


# ------------------------------ JAX wrapper ----------------------------------

def mlp4_forward(prepared, x, unpad=True):
    """Exact semantics of MLP4.forward (bf16 matmuls, f32 accumulation).

    `prepared` comes from prepare_params(); if downstream code can consume the
    128-padded outputs directly, pass unpad=False to skip the slice copies.
    """
    if x.ndim == 1:
        x = x[:, None]                      # torch: x = x.unsqueeze(1)
    B, Din = x.shape
    din, hid, ncls = prepared["dims"]
    din_p, h_p, c_p = prepared["pdims"]
    assert Din == din, f"expected input dim {din}, got {Din}"

    vmem_cap = _vmem_capacity_bytes()
    TM = _pick_tm(B, din_p, h_p, c_p, vmem_cap)
    B_p = _round_up(B, TM)

    # Cast to bf16 BEFORE padding: halves the padded-copy traffic.
    xp = jnp.pad(x.astype(jnp.bfloat16), ((0, B_p - B), (0, din_p - Din)))

    def resident(r, c):
        # Weight/bias blocks: same block every grid step -> single buffer.
        return pl.BlockSpec((r, c), lambda i: (0, 0),
                            pipeline_mode=pl.Buffered(1))

    # Generation-aware scoped-VMEM limit (<=100 MiB on v5e/v6e, ~51 MiB v7x).
    vmem_limit = min(int(0.8 * vmem_cap), 100 << 20)

    feat_p, logits_p = pl.pallas_call(
        _mlp4_kernel,
        out_shape=(jax.ShapeDtypeStruct((B_p, h_p), jnp.float32),
                   jax.ShapeDtypeStruct((B_p, c_p), jnp.float32)),
        grid=(B_p // TM,),
        in_specs=[
            pl.BlockSpec((TM, din_p), lambda i: (i, 0)),   # x: batch-tiled
            resident(din_p, h_p), resident(1, h_p),        # fc1
            resident(h_p, h_p), resident(1, h_p),          # fc2
            resident(h_p, h_p), resident(1, h_p),          # fc3
            resident(h_p, c_p), resident(1, c_p),          # fc4
        ],
        out_specs=(
            pl.BlockSpec((TM, h_p), lambda i: (i, 0)),     # before_logits
            pl.BlockSpec((TM, c_p), lambda i: (i, 0)),     # logits
        ),
        compiler_params=pltpu.CompilerParams(
            dimension_semantics=("parallel",),
            vmem_limit_bytes=vmem_limit),
    )(xp, *prepared["tensors"])

    if not unpad:
        return {"before_logits": feat_p, "logits": logits_p}
    return {"before_logits": feat_p[:B, :hid],
            "logits": logits_p[:B, :ncls]}


def _reference(params, x):
    """Pure-JAX f32 reference for correctness checking."""
    if x.ndim == 1:
        x = x[:, None]
    h = x
    for name in ("fc1", "fc2", "fc3"):
        w, b = params[name]
        h = jnp.maximum(h @ w + b, 0.0)
    w, b = params["fc4"]
    return {"before_logits": h, "logits": h @ w + b}


# ----------------------------------- main ------------------------------------

if __name__ == "__main__":
    key = jax.random.PRNGKey(0)
    kx, kx2, kp = jax.random.split(key, 3)

    in_dims, hid_dims, num_classes = 64, 32, 10
    params = init_params(kp, in_dims, hid_dims, num_classes)
    prepared = prepare_params(params)        # pad + bf16-cast once (cold path)

    # --- small batch (grid = 1) ---
    batch = 8
    x = jax.random.normal(kx, (batch, in_dims), jnp.float32)
    out = jax.block_until_ready(mlp4_forward(prepared, x))

    assert out["logits"].shape == (batch, num_classes)
    assert out["before_logits"].shape == (batch, hid_dims)
    assert out["logits"].dtype == jnp.float32

    ref = _reference(params, x)
    # bf16 operands / f32 accumulation -> loose tolerance vs. f32 reference.
    assert jnp.allclose(out["logits"], ref["logits"], atol=5e-2, rtol=5e-2)
    assert jnp.allclose(out["before_logits"], ref["before_logits"],
                        atol=5e-2, rtol=5e-2)

    # --- moderate batch (grid >= 2: exercises megacore sharding + pipelining)
    batch2 = 192
    x2 = jax.random.normal(kx2, (batch2, in_dims), jnp.float32)
    out2 = jax.block_until_ready(mlp4_forward(prepared, x2))
    ref2 = _reference(params, x2)
    assert out2["logits"].shape == (batch2, num_classes)
    assert jnp.allclose(out2["logits"], ref2["logits"], atol=5e-2, rtol=5e-2)
    assert jnp.allclose(out2["before_logits"], ref2["before_logits"],
                        atol=5e-2, rtol=5e-2)

    print("KERNEL_OK")
</pallas_src>

<mosaic_0001>
module attributes {stable_mosaic.version = 11 : i64} {
  func.func @_mlp4_kernel(%arg0: i32, %arg1: memref<16x128xbf16, #tpu.memory_space<vmem>>, %arg2: memref<128x128xbf16, #tpu.memory_space<vmem>>, %arg3: memref<1x128xf32, #tpu.memory_space<vmem>>, %arg4: memref<128x128xbf16, #tpu.memory_space<vmem>>, %arg5: memref<1x128xf32, #tpu.memory_space<vmem>>, %arg6: memref<128x128xbf16, #tpu.memory_space<vmem>>, %arg7: memref<1x128xf32, #tpu.memory_space<vmem>>, %arg8: memref<128x128xbf16, #tpu.memory_space<vmem>>, %arg9: memref<1x128xf32, #tpu.memory_space<vmem>>, %arg10: memref<16x128xf32, #tpu.memory_space<vmem>>, %arg11: memref<16x128xf32, #tpu.memory_space<vmem>>) attributes {dimension_semantics = [#tpu.dimension_semantics<parallel>], iteration_bounds = array<i64: 1>, scalar_prefetch = 0 : i64, scratch_operands = 0 : i64, tpu.core_type = #tpu.core_type<tc>, window_params = [{transform_indices = @transform_0, window_bounds = array<i64: 16, 128>}, {pipeline_mode = #tpu.pipeline_mode<synchronous>, transform_indices = @transform_1, window_bounds = array<i64: 128, 128>}, {pipeline_mode = #tpu.pipeline_mode<synchronous>, transform_indices = @transform_2, window_bounds = array<i64: 1, 128>}, {pipeline_mode = #tpu.pipeline_mode<synchronous>, transform_indices = @transform_3, window_bounds = array<i64: 128, 128>}, {pipeline_mode = #tpu.pipeline_mode<synchronous>, transform_indices = @transform_4, window_bounds = array<i64: 1, 128>}, {pipeline_mode = #tpu.pipeline_mode<synchronous>, transform_indices = @transform_5, window_bounds = array<i64: 128, 128>}, {pipeline_mode = #tpu.pipeline_mode<synchronous>, transform_indices = @transform_6, window_bounds = array<i64: 1, 128>}, {pipeline_mode = #tpu.pipeline_mode<synchronous>, transform_indices = @transform_7, window_bounds = array<i64: 128, 128>}, {pipeline_mode = #tpu.pipeline_mode<synchronous>, transform_indices = @transform_8, window_bounds = array<i64: 1, 128>}, {transform_indices = @transform_9, window_bounds = array<i64: 16, 128>}, {transform_indices = @transform_10, window_bounds = array<i64: 16, 128>}]} {
    %c0 = arith.constant 0 : index
    %c0_0 = arith.constant 0 : index
    %0 = vector.load %arg1[%c0, %c0_0] : memref<16x128xbf16, #tpu.memory_space<vmem>>, vector<16x128xbf16>
    %c0_1 = arith.constant 0 : index
    %c0_2 = arith.constant 0 : index
    %1 = vector.load %arg2[%c0_1, %c0_2] : memref<128x128xbf16, #tpu.memory_space<vmem>>, vector<128x128xbf16>
    %cst = arith.constant dense<0.000000e+00> : vector<16x128xf32>
    %2 = tpu.matmul %0, %1, %cst {dimension_numbers = #tpu.dot_dimension_numbers<[1], [0], [0], [1], [0, 0, 1, 1], [], []>} : vector<16x128xbf16>, vector<128x128xbf16>, vector<16x128xf32> -> vector<16x128xf32>
    %c0_3 = arith.constant 0 : index
    %c0_4 = arith.constant 0 : index
    %3 = vector.load %arg3[%c0_3, %c0_4] : memref<1x128xf32, #tpu.memory_space<vmem>>, vector<1x128xf32>
    %4 = vector.broadcast %3 : vector<1x128xf32> to vector<16x128xf32>
    %5 = arith.addf %2, %4 : vector<16x128xf32>
    %cst_5 = arith.constant 0.000000e+00 : f32
    %6 = vector.broadcast %cst_5 : f32 to vector<16x128xf32>
    %7 = arith.maximumf %5, %6 : vector<16x128xf32>
    %8 = arith.truncf %7 : vector<16x128xf32> to vector<16x128xbf16>
    %c0_6 = arith.constant 0 : index
    %c0_7 = arith.constant 0 : index
    %9 = vector.load %arg4[%c0_6, %c0_7] : memref<128x128xbf16, #tpu.memory_space<vmem>>, vector<128x128xbf16>
    %cst_8 = arith.constant dense<0.000000e+00> : vector<16x128xf32>
    %10 = tpu.matmul %8, %9, %cst_8 {dimension_numbers = #tpu.dot_dimension_numbers<[1], [0], [0], [1], [0, 0, 1, 1], [], []>} : vector<16x128xbf16>, vector<128x128xbf16>, vector<16x128xf32> -> vector<16x128xf32>
    %c0_9 = arith.constant 0 : index
    %c0_10 = arith.constant 0 : index
    %11 = vector.load %arg5[%c0_9, %c0_10] : memref<1x128xf32, #tpu.memory_space<vmem>>, vector<1x128xf32>
    %12 = vector.broadcast %11 : vector<1x128xf32> to vector<16x128xf32>
    %13 = arith.addf %10, %12 : vector<16x128xf32>
    %cst_11 = arith.constant 0.000000e+00 : f32
    %14 = vector.broadcast %cst_11 : f32 to vector<16x128xf32>
    %15 = arith.maximumf %13, %14 : vector<16x128xf32>
    %16 = arith.truncf %15 : vector<16x128xf32> to vector<16x128xbf16>
    %c0_12 = arith.constant 0 : index
    %c0_13 = arith.constant 0 : index
    %17 = vector.load %arg6[%c0_12, %c0_13] : memref<128x128xbf16, #tpu.memory_space<vmem>>, vector<128x128xbf16>
    %cst_14 = arith.constant dense<0.000000e+00> : vector<16x128xf32>
    %18 = tpu.matmul %16, %17, %cst_14 {dimension_numbers = #tpu.dot_dimension_numbers<[1], [0], [0], [1], [0, 0, 1, 1], [], []>} : vector<16x128xbf16>, vector<128x128xbf16>, vector<16x128xf32> -> vector<16x128xf32>
    %c0_15 = arith.constant 0 : index
    %c0_16 = arith.constant 0 : index
    %19 = vector.load %arg7[%c0_15, %c0_16] : memref<1x128xf32, #tpu.memory_space<vmem>>, vector<1x128xf32>
    %20 = vector.broadcast %19 : vector<1x128xf32> to vector<16x128xf32>
    %21 = arith.addf %18, %20 : vector<16x128xf32>
    %cst_17 = arith.constant 0.000000e+00 : f32
    %22 = vector.broadcast %cst_17 : f32 to vector<16x128xf32>
    %23 = arith.maximumf %21, %22 : vector<16x128xf32>
    %c0_18 = arith.constant 0 : index
    %c0_19 = arith.constant 0 : index
    %24 = vector.load %arg10[%c0_18, %c0_19] : memref<16x128xf32, #tpu.memory_space<vmem>>, vector<16x128xf32>
    tpu.vector_store %arg10[%c0_18, %c0_19], %23 {strides = array<i32>} : memref<16x128xf32, #tpu.memory_space<vmem>>, vector<16x128xf32>,
    %25 = arith.truncf %23 : vector<16x128xf32> to vector<16x128xbf16>
    %c0_20 = arith.constant 0 : index
    %c0_21 = arith.constant 0 : index
    %26 = vector.load %arg8[%c0_20, %c0_21] : memref<128x128xbf16, #tpu.memory_space<vmem>>, vector<128x128xbf16>
    %cst_22 = arith.constant dense<0.000000e+00> : vector<16x128xf32>
    %27 = tpu.matmul %25, %26, %cst_22 {dimension_numbers = #tpu.dot_dimension_numbers<[1], [0], [0], [1], [0, 0, 1, 1], [], []>} : vector<16x128xbf16>, vector<128x128xbf16>, vector<16x128xf32> -> vector<16x128xf32>
    %c0_23 = arith.constant 0 : index
    %c0_24 = arith.constant 0 : index
    %28 = vector.load %arg9[%c0_23, %c0_24] : memref<1x128xf32, #tpu.memory_space<vmem>>, vector<1x128xf32>
    %29 = vector.broadcast %28 : vector<1x128xf32> to vector<16x128xf32>
    %30 = arith.addf %27, %29 : vector<16x128xf32>
    %c0_25 = arith.constant 0 : index
    %c0_26 = arith.constant 0 : index
    %31 = vector.load %arg11[%c0_25, %c0_26] : memref<16x128xf32, #tpu.memory_space<vmem>>, vector<16x128xf32>
    tpu.vector_store %arg11[%c0_25, %c0_26], %30 {strides = array<i32>} : memref<16x128xf32, #tpu.memory_space<vmem>>, vector<16x128xf32>,
    return
  }
  func.func @transform_0(%arg0: i32) -> (i32, i32) {
    %c0_i32 = arith.constant 0 : i32
    %c0_i32_0 = arith.constant 0 : i32
    return %arg0, %c0_i32 : i32, i32
  }
  func.func @transform_1(%arg0: i32) -> (i32, i32) {
    %c0_i32 = arith.constant 0 : i32
    %c0_i32_0 = arith.constant 0 : i32
    %c0_i32_1 = arith.constant 0 : i32
    return %c0_i32, %c0_i32_0 : i32, i32
  }
  func.func @transform_2(%arg0: i32) -> (i32, i32) {
    %c0_i32 = arith.constant 0 : i32
    %c0_i32_0 = arith.constant 0 : i32
    %c0_i32_1 = arith.constant 0 : i32
    return %c0_i32, %c0_i32_0 : i32, i32
  }
  func.func @transform_3(%arg0: i32) -> (i32, i32) {
    %c0_i32 = arith.constant 0 : i32
    %c0_i32_0 = arith.constant 0 : i32
    %c0_i32_1 = arith.constant 0 : i32
    return %c0_i32, %c0_i32_0 : i32, i32
  }
  func.func @transform_4(%arg0: i32) -> (i32, i32) {
    %c0_i32 = arith.constant 0 : i32
    %c0_i32_0 = arith.constant 0 : i32
    %c0_i32_1 = arith.constant 0 : i32
    return %c0_i32, %c0_i32_0 : i32, i32
  }
  func.func @transform_5(%arg0: i32) -> (i32, i32) {
    %c0_i32 = arith.constant 0 : i32
    %c0_i32_0 = arith.constant 0 : i32
    %c0_i32_1 = arith.constant 0 : i32
    return %c0_i32, %c0_i32_0 : i32, i32
  }
  func.func @transform_6(%arg0: i32) -> (i32, i32) {
    %c0_i32 = arith.constant 0 : i32
    %c0_i32_0 = arith.constant 0 : i32
    %c0_i32_1 = arith.constant 0 : i32
    return %c0_i32, %c0_i32_0 : i32, i32
  }
  func.func @transform_7(%arg0: i32) -> (i32, i32) {
    %c0_i32 = arith.constant 0 : i32
    %c0_i32_0 = arith.constant 0 : i32
    %c0_i32_1 = arith.constant 0 : i32
    return %c0_i32, %c0_i32_0 : i32, i32
  }
  func.func @transform_8(%arg0: i32) -> (i32, i32) {
    %c0_i32 = arith.constant 0 : i32
    %c0_i32_0 = arith.constant 0 : i32
    %c0_i32_1 = arith.constant 0 : i32
    return %c0_i32, %c0_i32_0 : i32, i32
  }
  func.func @transform_9(%arg0: i32) -> (i32, i32) {
    %c0_i32 = arith.constant 0 : i32
    %c0_i32_0 = arith.constant 0 : i32
    return %arg0, %c0_i32 : i32, i32
  }
  func.func @transform_10(%arg0: i32) -> (i32, i32) {
    %c0_i32 = arith.constant 0 : i32
    %c0_i32_0 = arith.constant 0 : i32
    return %arg0, %c0_i32 : i32, i32
  }
}

</mosaic_0001>

<llo_original>
// kernel: tpu_custom_call.1
$region0: #{tpu_custom_call.1}
  #allocation0 [shape = 'u32[]', space=smem, size = 0x4, offset = 0x4, fixed_abs, tag = 'smem constant byte address 0x4 - core index']
  #allocation1 [shape = 'u32[144,128]{1,0:T(1,128)}', space=vmem, size = 0x12000, scoped, tag = 'internal scratch']
  %s0 = inlined_call_operand.hbm [shape: bf16[16,128], index: 0, kind: input, shape index: {}]
  %s1 = inlined_call_operand.hbm [shape: bf16[128,128], index: 1, kind: input, shape index: {}]
  %s2 = inlined_call_operand.vmem [shape: f32[1,128], index: 2, kind: input, shape index: {}]
  %s3 = inlined_call_operand.hbm [shape: bf16[128,128], index: 3, kind: input, shape index: {}]
  %s4 = inlined_call_operand.vmem [shape: f32[1,128], index: 4, kind: input, shape index: {}]
  %s5 = inlined_call_operand.hbm [shape: bf16[128,128], index: 5, kind: input, shape index: {}]
  %s6 = inlined_call_operand.vmem [shape: f32[1,128], index: 6, kind: input, shape index: {}]
  %s7 = inlined_call_operand.hbm [shape: bf16[128,128], index: 7, kind: input, shape index: {}]
  %s8 = inlined_call_operand.vmem [shape: f32[1,128], index: 8, kind: input, shape index: {}]
  %s9 = inlined_call_operand.hbm [shape: f32[16,128], index: 9, kind: output, shape index: {0}]
  %s10 = inlined_call_operand.hbm [shape: f32[16,128], index: 10, kind: output, shape index: {1}]
  %11 = xla_tuple %s9, %s10
  %s12 = sld [smem:[#allocation0]]
  $region74: #{tpu_custom_call.1} parent=0
    _
  %s14 = ssub.s32 1, %s12
  %s15 = scalar_select 0, %s14, %s12
  $region1: #{tpu_custom_call.1} parent=0
    #allocation2 [shape = 'u8[4096]{0}', space=vmem, size = 0x1000, scoped, tag = 'input window, operand 0, single buffered']
    #allocation3 [shape = 's32[1]{0}', space=sflag, size = 0x4, scoped, tag = 'scoped memory for tpu_custom_call.1']
    #allocation4 [shape = 's32[1]{0}', space=sflag, size = 0x4, scoped, tag = 'scoped memory for tpu_custom_call.1']
    #allocation5 [shape = 'u8[32768]{0}', space=vmem, size = 0x8000, scoped, tag = 'input window, operand 1, single buffered']
    #allocation6 [shape = 's32[1]{0}', space=sflag, size = 0x4, scoped, tag = 'scoped memory for tpu_custom_call.1']
    #allocation7 [shape = 'u8[32768]{0}', space=vmem, size = 0x8000, scoped, tag = 'input window, operand 3, single buffered']
    #allocation8 [shape = 'u8[32768]{0}', space=vmem, size = 0x8000, scoped, tag = 'input window, operand 5, single buffered']
    #allocation9 [shape = 's32[1]{0}', space=sflag, size = 0x4, scoped, tag = 'scoped memory for tpu_custom_call.1']
    #allocation10 [shape = 'u8[32768]{0}', space=vmem, size = 0x8000, scoped, tag = 'input window, operand 7, single buffered']
    #allocation11 [shape = 'u8[8192]{0}', space=vmem, size = 0x2000, scoped, tag = 'output window, operand 0, single buffered']
    #allocation12 [shape = 'u8[8192]{0}', space=vmem, size = 0x2000, scoped, tag = 'output window, operand 1, single buffered']
    #allocation13 [shape = 's32[1]{0}', space=sflag, size = 0x4, scoped, tag = 'scoped memory for tpu_custom_call.1']
    %16 = vsyncpa [#allocation3], 0
    %17 = vsyncpa [#allocation6], 0
    %18 = vsyncpa [#allocation9], 0
    %19 = vsyncpa [#allocation4], 0
    %20 = vsyncpa [#allocation13], 0
    // Predicated region
    $region2: #{tpu_custom_call.1} parent=1 // pred_check
      _
    $region3: #{tpu_custom_call.1} parent=1 // pred_check_branch
      %22 = sbr.rel (0) target = $region5
    $region4: #{tpu_custom_call.1} parent=1 // pred_region
      %s24 = ssub.s32 128, 128
      %25 = vsyncadd [#allocation3], %s24
      %s26 = sshll.u32 [#allocation2], 4
      %s27 = int_to_ptr.vmem [resolvable:$true] %s26
      %32 = dma.hbm_to_vmem [thread:$0]  %s0, 128, %s27, [#allocation3], 64, 64, 4
    $region5: #{tpu_custom_call.1} parent=1 // pred_fallthru
      _
    // Predicated region
    $region6: #{tpu_custom_call.1} parent=1 // pred_check
      _
    $region7: #{tpu_custom_call.1} parent=1 // pred_check_branch
      %34 = sbr.rel (0) target = $region9
    $region8: #{tpu_custom_call.1} parent=1 // pred_region
      %s36 = ssub.s32 1024, 1024
      %37 = vsyncadd [#allocation6], %s36
      %s38 = sshll.u32 [#allocation5], 4
      %s39 = int_to_ptr.vmem [resolvable:$true] %s38
      %44 = dma.hbm_to_vmem [thread:$0]  %s1, 1024, %s39, [#allocation6], 64, 64, 4
    $region9: #{tpu_custom_call.1} parent=1 // pred_fallthru
      _
    // Predicated region
    $region10: #{tpu_custom_call.1} parent=1 // pred_check
      _
    $region11: #{tpu_custom_call.1} parent=1 // pred_check_branch
      %46 = sbr.rel (0) target = $region13
    $region12: #{tpu_custom_call.1} parent=1 // pred_region
      _
    $region13: #{tpu_custom_call.1} parent=1 // pred_fallthru
      _
    // Predicated region
    $region14: #{tpu_custom_call.1} parent=1 // pred_check
      _
    $region15: #{tpu_custom_call.1} parent=1 // pred_check_branch
      %48 = sbr.rel (0) target = $region17
    $region16: #{tpu_custom_call.1} parent=1 // pred_region
      %s50 = ssub.s32 1024, 1024
      %51 = vsyncadd [#allocation6], %s50
      %s52 = sshll.u32 [#allocation7], 4
      %s53 = int_to_ptr.vmem [resolvable:$true] %s52
      %58 = dma.hbm_to_vmem [thread:$0]  %s3, 1024, %s53, [#allocation6], 64, 64, 4
    $region17: #{tpu_custom_call.1} parent=1 // pred_fallthru
      _
    // Predicated region
    $region18: #{tpu_custom_call.1} parent=1 // pred_check
      _
    $region19: #{tpu_custom_call.1} parent=1 // pred_check_branch
      %60 = sbr.rel (0) target = $region21
    $region20: #{tpu_custom_call.1} parent=1 // pred_region
      _
    $region21: #{tpu_custom_call.1} parent=1 // pred_fallthru
      _
    // Predicated region
    $region22: #{tpu_custom_call.1} parent=1 // pred_check
      _
    $region23: #{tpu_custom_call.1} parent=1 // pred_check_branch
      %62 = sbr.rel (0) target = $region25
    $region24: #{tpu_custom_call.1} parent=1 // pred_region
      %s64 = ssub.s32 1024, 1024
      %65 = vsyncadd [#allocation9], %s64
      %s66 = sshll.u32 [#allocation8], 4
      %s67 = int_to_ptr.vmem [resolvable:$true] %s66
      %72 = dma.hbm_to_vmem [thread:$0]  %s5, 1024, %s67, [#allocation9], 64, 64, 4
    $region25: #{tpu_custom_call.1} parent=1 // pred_fallthru
      _
    // Predicated region
    $region26: #{tpu_custom_call.1} parent=1 // pred_check
      _
    $region27: #{tpu_custom_call.1} parent=1 // pred_check_branch
      %74 = sbr.rel (0) target = $region29
    $region28: #{tpu_custom_call.1} parent=1 // pred_region
      _
    $region29: #{tpu_custom_call.1} parent=1 // pred_fallthru
      _
    // Predicated region
    $region30: #{tpu_custom_call.1} parent=1 // pred_check
      _
    $region31: #{tpu_custom_call.1} parent=1 // pred_check_branch
      %76 = sbr.rel (0) target = $region33
    $region32: #{tpu_custom_call.1} parent=1 // pred_region
      %s78 = ssub.s32 1024, 1024
      %79 = vsyncadd [#allocation9], %s78
      %s80 = sshll.u32 [#allocation10], 4
      %s81 = int_to_ptr.vmem [resolvable:$true] %s80
      %86 = dma.hbm_to_vmem [thread:$0]  %s7, 1024, %s81, [#allocation9], 64, 64, 4
    $region33: #{tpu_custom_call.1} parent=1 // pred_fallthru
      _
    // Predicated region
    $region34: #{tpu_custom_call.1} parent=1 // pred_check
      _
    $region35: #{tpu_custom_call.1} parent=1 // pred_check_branch
      %88 = sbr.rel (0) target = $region37
    $region36: #{tpu_custom_call.1} parent=1 // pred_region
      _
    $region37: #{tpu_custom_call.1} parent=1 // pred_fallthru
      _
    // Predicated region
    $region38: #{tpu_custom_call.1} parent=1 // pred_check
      _
    $region39: #{tpu_custom_call.1} parent=1 // pred_check_branch
      %90 = sbr.rel (0) target = $region41
    $region40: #{tpu_custom_call.1} parent=1 // pred_region
      %91 = dma.done [#allocation3], 128
    $region41: #{tpu_custom_call.1} parent=1 // pred_fallthru
      _
    // Predicated region
    $region42: #{tpu_custom_call.1} parent=1 // pred_check
      _
    $region43: #{tpu_custom_call.1} parent=1 // pred_check_branch
      %93 = sbr.rel (0) target = $region45
    $region44: #{tpu_custom_call.1} parent=1 // pred_region
      %94 = dma.done [#allocation6], 1024
    $region45: #{tpu_custom_call.1} parent=1 // pred_fallthru
      _
    // Predicated region
    $region46: #{tpu_custom_call.1} parent=1 // pred_check
      _
    $region47: #{tpu_custom_call.1} parent=1 // pred_check_branch
      %96 = sbr.rel (0) target = $region49
    $region48: #{tpu_custom_call.1} parent=1 // pred_region
      %97 = dma.done [#allocation6], 1024
    $region49: #{tpu_custom_call.1} parent=1 // pred_fallthru
      _
    // Predicated region
    $region50: #{tpu_custom_call.1} parent=1 // pred_check
      _
    $region51: #{tpu_custom_call.1} parent=1 // pred_check_branch
      %99 = sbr.rel (0) target = $region53
    $region52: #{tpu_custom_call.1} parent=1 // pred_region
      %100 = dma.done [#allocation9], 1024
    $region53: #{tpu_custom_call.1} parent=1 // pred_fallthru
      _
    // Predicated region
    $region54: #{tpu_custom_call.1} parent=1 // pred_check
      _
    $region55: #{tpu_custom_call.1} parent=1 // pred_check_branch
      %102 = sbr.rel (0) target = $region57
    $region56: #{tpu_custom_call.1} parent=1 // pred_region
      %103 = dma.done [#allocation9], 1024
    $region57: #{tpu_custom_call.1} parent=1 // pred_fallthru
      _
    %v105 = vld [vmem:[#allocation2] sm:$0xf]
    %v106 = vld [vmem:[#allocation2 + $0x4] sm:$0xf]
    %v107 = vld [vmem:[#allocation5] sm:$0xf]
    %v108 = vld [vmem:[#allocation5 + $0x4] sm:$0xf]
    %v109 = vld [vmem:[#allocation5 + $0x8] sm:$0xf]
    %v110 = vld [vmem:[#allocation5 + $0xc] sm:$0xf]
    %v111 = vld [vmem:[#allocation5 + $0x10] sm:$0xf]
    %v112 = vld [vmem:[#allocation5 + $0x14] sm:$0xf]
    %v113 = vld [vmem:[#allocation5 + $0x18] sm:$0xf]
    %v114 = vld [vmem:[#allocation5 + $0x1c] sm:$0xf]
    %v115 = vld [vmem:[#allocation5 + $0x20] sm:$0xf]
    %v116 = vld [vmem:[#allocation5 + $0x24] sm:$0xf]
    %v117 = vld [vmem:[#allocation5 + $0x28] sm:$0xf]
    %v118 = vld [vmem:[#allocation5 + $0x2c] sm:$0xf]
    %v119 = vld [vmem:[#allocation5 + $0x30] sm:$0xf]
    %v120 = vld [vmem:[#allocation5 + $0x34] sm:$0xf]
    %v121 = vld [vmem:[#allocation5 + $0x38] sm:$0xf]
    %v122 = vld [vmem:[#allocation5 + $0x3c] sm:$0xf]
    %v123 = vld [vmem:[%s2] sm:$0x1]
    %v125 = vlaneseq
    %v126 = vshrl.u32 %v125, 7
    %v127 = vsub.s32 0, %v126
    %v128 = vrot.slane %v123, %v127
    %v132 = vunpack.c.l.b16 %v105
    %v133 = vunpack.c.l.b16 %v106
    %v134 = vpack.c.b16 %v133, %v132
    %v152 = vunpack.c.l.b16 %v107
    %v153 = vunpack.c.l.b16 %v108
    %v154 = vunpack.c.l.b16 %v109
    %v155 = vunpack.c.l.b16 %v110
    %v156 = vunpack.c.l.b16 %v111
    %v157 = vunpack.c.l.b16 %v112
    %v158 = vunpack.c.l.b16 %v113
    %v159 = vunpack.c.l.b16 %v114
    %v160 = vunpack.c.l.b16 %v115
    %v161 = vunpack.c.l.b16 %v116
    %v162 = vunpack.c.l.b16 %v117
    %v163 = vunpack.c.l.b16 %v118
    %v164 = vunpack.c.l.b16 %v119
    %v165 = vunpack.c.l.b16 %v120
    %v166 = vunpack.c.l.b16 %v121
    %v167 = vunpack.c.l.b16 %v122
    %v168 = vpack.c.b16 %v153, %v152
    %v169 = vpack.c.b16 %v155, %v154
    %v170 = vpack.c.b16 %v157, %v156
    %v171 = vpack.c.b16 %v159, %v158
    %v172 = vpack.c.b16 %v161, %v160
    %v173 = vpack.c.b16 %v163, %v162
    %v174 = vpack.c.b16 %v165, %v164
    %v175 = vpack.c.b16 %v167, %v166
    %184 = vmatprep.subr.bf16.mxu0 0
    %185 = vmatpush1.bf16.msra.mxu0 %v168
    %186 = vmatprep.subr.bf16.mxu0 0
    %187 = vmatpush1.bf16.msra.mxu0 %v169
    %188 = vmatprep.subr.bf16.mxu0 0
    %189 = vmatpush1.bf16.msra.mxu0 %v170
    %190 = vmatprep.subr.bf16.mxu0 0
    %191 = vmatpush1.bf16.msra.mxu0 %v171
    %192 = vmatprep.subr.bf16.mxu0 0
    %193 = vmatpush1.bf16.msra.mxu0 %v172
    %194 = vmatprep.subr.bf16.mxu0 0
    %195 = vmatpush1.bf16.msra.mxu0 %v173
    %196 = vmatprep.subr.bf16.mxu0 0
    %197 = vmatpush1.bf16.msra.mxu0 %v174
    %198 = vmatprep.subr.bf16.mxu0 0
    %199 = vmatpush1.bf16.msra.mxu0 %v175
    %200 = vmatprep.subr.bf16.mxu0 0
    %201 = vmatpush1.bf16.msra.mxu0 0
    %202 = vmatprep.subr.bf16.mxu0 0
    %203 = vmatpush1.bf16.msra.mxu0 0
    %204 = vmatprep.subr.bf16.mxu0 0
    %205 = vmatpush1.bf16.msra.mxu0 0
    %206 = vmatprep.subr.bf16.mxu0 0
    %207 = vmatpush1.bf16.msra.mxu0 0
    %208 = vmatprep.subr.bf16.mxu0 0
    %209 = vmatpush1.bf16.msra.mxu0 0
    %210 = vmatprep.subr.bf16.mxu0 0
    %211 = vmatpush1.bf16.msra.mxu0 0
    %212 = vmatprep.subr.bf16.mxu0 0
    %213 = vmatpush1.bf16.msra.mxu0 0
    %214 = vmatprep.subr.bf16.mxu0 0
    %215 = vmatpush1.bf16.msra.mxu0 0
    %216 = vmatprep.mubr.bf16.mxu0 0
    %217 = vmatmul.mubr.bf16.gmra.mrb[0].mxu0 %v134
    %v218 = vpop.f32.mrb[0].mxu0
    %v219 = vadd.f32 %v128, %v218
    %v220 = vpop.f32.mrb[0].mxu0
    %v221 = vpop.f32.mrb[0].mxu0
    %v222 = vadd.f32 %v128, %v221
    %v223 = vpop.f32.mrb[0].mxu0
    %224 = vdwg.mxu0
    %v225 = vmax.f32 %v219, 0.0
    %v226 = vmax.f32 %v222, 0.0
    %v227 = vpack.c.bf16 %v226, %v225
    %v228 = vld [vmem:[#allocation7] sm:$0xf]
    %v229 = vld [vmem:[#allocation7 + $0x4] sm:$0xf]
    %v230 = vld [vmem:[#allocation7 + $0x8] sm:$0xf]
    %v231 = vld [vmem:[#allocation7 + $0xc] sm:$0xf]
    %v232 = vld [vmem:[#allocation7 + $0x10] sm:$0xf]
    %v233 = vld [vmem:[#allocation7 + $0x14] sm:$0xf]
    %v234 = vld [vmem:[#allocation7 + $0x18] sm:$0xf]
    %v235 = vld [vmem:[#allocation7 + $0x1c] sm:$0xf]
    %v236 = vld [vmem:[#allocation7 + $0x20] sm:$0xf]
    %v237 = vld [vmem:[#allocation7 + $0x24] sm:$0xf]
    %v238 = vld [vmem:[#allocation7 + $0x28] sm:$0xf]
    %v239 = vld [vmem:[#allocation7 + $0x2c] sm:$0xf]
    %v240 = vld [vmem:[#allocation7 + $0x30] sm:$0xf]
    %v241 = vld [vmem:[#allocation7 + $0x34] sm:$0xf]
    %v242 = vld [vmem:[#allocation7 + $0x38] sm:$0xf]
    %v243 = vld [vmem:[#allocation7 + $0x3c] sm:$0xf]
    %v244 = vld [vmem:[%s4] sm:$0x1]
    %v246 = vlaneseq
    %v247 = vshrl.u32 %v246, 7
    %v248 = vsub.s32 0, %v247
    %v249 = vrot.slane %v244, %v248
    %v267 = vunpack.c.l.b16 %v228
    %v268 = vunpack.c.l.b16 %v229
    %v269 = vunpack.c.l.b16 %v230
    %v270 = vunpack.c.l.b16 %v231
    %v271 = vunpack.c.l.b16 %v232
    %v272 = vunpack.c.l.b16 %v233
    %v273 = vunpack.c.l.b16 %v234
    %v274 = vunpack.c.l.b16 %v235
    %v275 = vunpack.c.l.b16 %v236
    %v276 = vunpack.c.l.b16 %v237
    %v277 = vunpack.c.l.b16 %v238
    %v278 = vunpack.c.l.b16 %v239
    %v279 = vunpack.c.l.b16 %v240
    %v280 = vunpack.c.l.b16 %v241
    %v281 = vunpack.c.l.b16 %v242
    %v282 = vunpack.c.l.b16 %v243
    %v283 = vpack.c.b16 %v268, %v267
    %v284 = vpack.c.b16 %v270, %v269
    %v285 = vpack.c.b16 %v272, %v271
    %v286 = vpack.c.b16 %v274, %v273
    %v287 = vpack.c.b16 %v276, %v275
    %v288 = vpack.c.b16 %v278, %v277
    %v289 = vpack.c.b16 %v280, %v279
    %v290 = vpack.c.b16 %v282, %v281
    %299 = vmatprep.subr.bf16.mxu0 0
    %300 = vmatpush1.bf16.msra.mxu0 %v283
    %301 = vmatprep.subr.bf16.mxu0 0
    %302 = vmatpush1.bf16.msra.mxu0 %v284
    %303 = vmatprep.subr.bf16.mxu0 0
    %304 = vmatpush1.bf16.msra.mxu0 %v285
    %305 = vmatprep.subr.bf16.mxu0 0
    %306 = vmatpush1.bf16.msra.mxu0 %v286
    %307 = vmatprep.subr.bf16.mxu0 0
    %308 = vmatpush1.bf16.msra.mxu0 %v287
    %309 = vmatprep.subr.bf16.mxu0 0
    %310 = vmatpush1.bf16.msra.mxu0 %v288
    %311 = vmatprep.subr.bf16.mxu0 0
    %312 = vmatpush1.bf16.msra.mxu0 %v289
    %313 = vmatprep.subr.bf16.mxu0 0
    %314 = vmatpush1.bf16.msra.mxu0 %v290
    %315 = vmatprep.subr.bf16.mxu0 0
    %316 = vmatpush1.bf16.msra.mxu0 0
    %317 = vmatprep.subr.bf16.mxu0 0
    %318 = vmatpush1.bf16.msra.mxu0 0
    %319 = vmatprep.subr.bf16.mxu0 0
    %320 = vmatpush1.bf16.msra.mxu0 0
    %321 = vmatprep.subr.bf16.mxu0 0
    %322 = vmatpush1.bf16.msra.mxu0 0
    %323 = vmatprep.subr.bf16.mxu0 0
    %324 = vmatpush1.bf16.msra.mxu0 0
    %325 = vmatprep.subr.bf16.mxu0 0
    %326 = vmatpush1.bf16.msra.mxu0 0
    %327 = vmatprep.subr.bf16.mxu0 0
    %328 = vmatpush1.bf16.msra.mxu0 0
    %329 = vmatprep.subr.bf16.mxu0 0
    %330 = vmatpush1.bf16.msra.mxu0 0
    %331 = vmatprep.mubr.bf16.mxu0 0
    %332 = vmatmul.mubr.bf16.gmra.mrb[0].mxu0 %v227
    %v333 = vpop.f32.mrb[0].mxu0
    %v334 = vadd.f32 %v249, %v333
    %v335 = vpop.f32.mrb[0].mxu0
    %v336 = vpop.f32.mrb[0].mxu0
    %v337 = vadd.f32 %v249, %v336
    %v338 = vpop.f32.mrb[0].mxu0
    %339 = vdwg.mxu0
    %v340 = vmax.f32 %v334, 0.0
    %v341 = vmax.f32 %v337, 0.0
    %v342 = vpack.c.bf16 %v341, %v340
    %v343 = vld [vmem:[#allocation8] sm:$0xf]
    %v344 = vld [vmem:[#allocation8 + $0x4] sm:$0xf]
    %v345 = vld [vmem:[#allocation8 + $0x8] sm:$0xf]
    %v346 = vld [vmem:[#allocation8 + $0xc] sm:$0xf]
    %v347 = vld [vmem:[#allocation8 + $0x10] sm:$0xf]
    %v348 = vld [vmem:[#allocation8 + $0x14] sm:$0xf]
    %v349 = vld [vmem:[#allocation8 + $0x18] sm:$0xf]
    %v350 = vld [vmem:[#allocation8 + $0x1c] sm:$0xf]
    %v351 = vld [vmem:[#allocation8 + $0x20] sm:$0xf]
    %v352 = vld [vmem:[#allocation8 + $0x24] sm:$0xf]
    %v353 = vld [vmem:[#allocation8 + $0x28] sm:$0xf]
    %v354 = vld [vmem:[#allocation8 + $0x2c] sm:$0xf]
    %v355 = vld [vmem:[#allocation8 + $0x30] sm:$0xf]
    %v356 = vld [vmem:[#allocation8 + $0x34] sm:$0xf]
    %v357 = vld [vmem:[#allocation8 + $0x38] sm:$0xf]
    %v358 = vld [vmem:[#allocation8 + $0x3c] sm:$0xf]
    %v359 = vld [vmem:[%s6] sm:$0x1]
    %v361 = vlaneseq
    %v362 = vshrl.u32 %v361, 7
    %v363 = vsub.s32 0, %v362
    %v364 = vrot.slane %v359, %v363
    %v382 = vunpack.c.l.b16 %v343
    %v383 = vunpack.c.l.b16 %v344
    %v384 = vunpack.c.l.b16 %v345
    %v385 = vunpack.c.l.b16 %v346
    %v386 = vunpack.c.l.b16 %v347
    %v387 = vunpack.c.l.b16 %v348
    %v388 = vunpack.c.l.b16 %v349
    %v389 = vunpack.c.l.b16 %v350
    %v390 = vunpack.c.l.b16 %v351
    %v391 = vunpack.c.l.b16 %v352
    %v392 = vunpack.c.l.b16 %v353
    %v393 = vunpack.c.l.b16 %v354
    %v394 = vunpack.c.l.b16 %v355
    %v395 = vunpack.c.l.b16 %v356
    %v396 = vunpack.c.l.b16 %v357
    %v397 = vunpack.c.l.b16 %v358
    %v398 = vpack.c.b16 %v383, %v382
    %v399 = vpack.c.b16 %v385, %v384
    %v400 = vpack.c.b16 %v387, %v386
    %v401 = vpack.c.b16 %v389, %v388
    %v402 = vpack.c.b16 %v391, %v390
    %v403 = vpack.c.b16 %v393, %v392
    %v404 = vpack.c.b16 %v395, %v394
    %v405 = vpack.c.b16 %v397, %v396
    %414 = vmatprep.subr.bf16.mxu0 0
    %415 = vmatpush1.bf16.msra.mxu0 %v398
    %416 = vmatprep.subr.bf16.mxu0 0
    %417 = vmatpush1.bf16.msra.mxu0 %v399
    %418 = vmatprep.subr.bf16.mxu0 0
    %419 = vmatpush1.bf16.msra.mxu0 %v400
    %420 = vmatprep.subr.bf16.mxu0 0
    %421 = vmatpush1.bf16.msra.mxu0 %v401
    %422 = vmatprep.subr.bf16.mxu0 0
    %423 = vmatpush1.bf16.msra.mxu0 %v402
    %424 = vmatprep.subr.bf16.mxu0 0
    %425 = vmatpush1.bf16.msra.mxu0 %v403
    %426 = vmatprep.subr.bf16.mxu0 0
    %427 = vmatpush1.bf16.msra.mxu0 %v404
    %428 = vmatprep.subr.bf16.mxu0 0
    %429 = vmatpush1.bf16.msra.mxu0 %v405
    %430 = vmatprep.subr.bf16.mxu0 0
    %431 = vmatpush1.bf16.msra.mxu0 0
    %432 = vmatprep.subr.bf16.mxu0 0
    %433 = vmatpush1.bf16.msra.mxu0 0
    %434 = vmatprep.subr.bf16.mxu0 0
    %435 = vmatpush1.bf16.msra.mxu0 0
    %436 = vmatprep.subr.bf16.mxu0 0
    %437 = vmatpush1.bf16.msra.mxu0 0
    %438 = vmatprep.subr.bf16.mxu0 0
    %439 = vmatpush1.bf16.msra.mxu0 0
    %440 = vmatprep.subr.bf16.mxu0 0
    %441 = vmatpush1.bf16.msra.mxu0 0
    %442 = vmatprep.subr.bf16.mxu0 0
    %443 = vmatpush1.bf16.msra.mxu0 0
    %444 = vmatprep.subr.bf16.mxu0 0
    %445 = vmatpush1.bf16.msra.mxu0 0
    %446 = vmatprep.mubr.bf16.mxu0 0
    %447 = vmatmul.mubr.bf16.gmra.mrb[0].mxu0 %v342
    %v448 = vpop.f32.mrb[0].mxu0
    %v449 = vadd.f32 %v364, %v448
    %v450 = vpop.f32.mrb[0].mxu0
    %v451 = vpop.f32.mrb[0].mxu0
    %v452 = vadd.f32 %v364, %v451
    %v453 = vpop.f32.mrb[0].mxu0
    %454 = vdwg.mxu0
    %v455 = vmax.f32 %v449, 0.0
    %v456 = vmax.f32 %v452, 0.0
    %457 = vst [vmem:[#allocation11] sm:$0xff] %v455
    %458 = vst [vmem:[#allocation11 + $0x8] sm:$0xff] %v456
    %v459 = vpack.c.bf16 %v456, %v455
    %v460 = vld [vmem:[#allocation10] sm:$0xf]
    %v461 = vld [vmem:[#allocation10 + $0x4] sm:$0xf]
    %v462 = vld [vmem:[#allocation10 + $0x8] sm:$0xf]
    %v463 = vld [vmem:[#allocation10 + $0xc] sm:$0xf]
    %v464 = vld [vmem:[#allocation10 + $0x10] sm:$0xf]
    %v465 = vld [vmem:[#allocation10 + $0x14] sm:$0xf]
    %v466 = vld [vmem:[#allocation10 + $0x18] sm:$0xf]
    %v467 = vld [vmem:[#allocation10 + $0x1c] sm:$0xf]
    %v468 = vld [vmem:[#allocation10 + $0x20] sm:$0xf]
    %v469 = vld [vmem:[#allocation10 + $0x24] sm:$0xf]
    %v470 = vld [vmem:[#allocation10 + $0x28] sm:$0xf]
    %v471 = vld [vmem:[#allocation10 + $0x2c] sm:$0xf]
    %v472 = vld [vmem:[#allocation10 + $0x30] sm:$0xf]
    %v473 = vld [vmem:[#allocation10 + $0x34] sm:$0xf]
    %v474 = vld [vmem:[#allocation10 + $0x38] sm:$0xf]
    %v475 = vld [vmem:[#allocation10 + $0x3c] sm:$0xf]
    %v476 = vld [vmem:[%s8] sm:$0x1]
    %v478 = vlaneseq
    %v479 = vshrl.u32 %v478, 7
    %v480 = vsub.s32 0, %v479
    %v481 = vrot.slane %v476, %v480
    %v499 = vunpack.c.l.b16 %v460
    %v500 = vunpack.c.l.b16 %v461
    %v501 = vunpack.c.l.b16 %v462
    %v502 = vunpack.c.l.b16 %v463
    %v503 = vunpack.c.l.b16 %v464
    %v504 = vunpack.c.l.b16 %v465
    %v505 = vunpack.c.l.b16 %v466
    %v506 = vunpack.c.l.b16 %v467
    %v507 = vunpack.c.l.b16 %v468
    %v508 = vunpack.c.l.b16 %v469
    %v509 = vunpack.c.l.b16 %v470
    %v510 = vunpack.c.l.b16 %v471
    %v511 = vunpack.c.l.b16 %v472
    %v512 = vunpack.c.l.b16 %v473
    %v513 = vunpack.c.l.b16 %v474
    %v514 = vunpack.c.l.b16 %v475
    %v515 = vpack.c.b16 %v500, %v499
    %v516 = vpack.c.b16 %v502, %v501
    %v517 = vpack.c.b16 %v504, %v503
    %v518 = vpack.c.b16 %v506, %v505
    %v519 = vpack.c.b16 %v508, %v507
    %v520 = vpack.c.b16 %v510, %v509
    %v521 = vpack.c.b16 %v512, %v511
    %v522 = vpack.c.b16 %v514, %v513
    %531 = vmatprep.subr.bf16.mxu0 0
    %532 = vmatpush1.bf16.msra.mxu0 %v515
    %533 = vmatprep.subr.bf16.mxu0 0
    %534 = vmatpush1.bf16.msra.mxu0 %v516
    %535 = vmatprep.subr.bf16.mxu0 0
    %536 = vmatpush1.bf16.msra.mxu0 %v517
    %537 = vmatprep.subr.bf16.mxu0 0
    %538 = vmatpush1.bf16.msra.mxu0 %v518
    %539 = vmatprep.subr.bf16.mxu0 0
    %540 = vmatpush1.bf16.msra.mxu0 %v519
    %541 = vmatprep.subr.bf16.mxu0 0
    %542 = vmatpush1.bf16.msra.mxu0 %v520
    %543 = vmatprep.subr.bf16.mxu0 0
    %544 = vmatpush1.bf16.msra.mxu0 %v521
    %545 = vmatprep.subr.bf16.mxu0 0
    %546 = vmatpush1.bf16.msra.mxu0 %v522
    %547 = vmatprep.subr.bf16.mxu0 0
    %548 = vmatpush1.bf16.msra.mxu0 0
    %549 = vmatprep.subr.bf16.mxu0 0
    %550 = vmatpush1.bf16.msra.mxu0 0
    %551 = vmatprep.subr.bf16.mxu0 0
    %552 = vmatpush1.bf16.msra.mxu0 0
    %553 = vmatprep.subr.bf16.mxu0 0
    %554 = vmatpush1.bf16.msra.mxu0 0
    %555 = vmatprep.subr.bf16.mxu0 0
    %556 = vmatpush1.bf16.msra.mxu0 0
    %557 = vmatprep.subr.bf16.mxu0 0
    %558 = vmatpush1.bf16.msra.mxu0 0
    %559 = vmatprep.subr.bf16.mxu0 0
    %560 = vmatpush1.bf16.msra.mxu0 0
    %561 = vmatprep.subr.bf16.mxu0 0
    %562 = vmatpush1.bf16.msra.mxu0 0
    %563 = vmatprep.mubr.bf16.mxu0 0
    %564 = vmatmul.mubr.bf16.gmra.mrb[0].mxu0 %v459
    %v565 = vpop.f32.mrb[0].mxu0
    %v566 = vadd.f32 %v481, %v565
    %v567 = vpop.f32.mrb[0].mxu0
    %v568 = vpop.f32.mrb[0].mxu0
    %v569 = vadd.f32 %v481, %v568
    %v570 = vpop.f32.mrb[0].mxu0
    %571 = vdwg.mxu0
    %572 = vst [vmem:[#allocation12] sm:$0xff] %v566
    %573 = vst [vmem:[#allocation12 + $0x8] sm:$0xff] %v569
    // Predicated region
    $region58: #{tpu_custom_call.1} parent=1 // pred_check
      _
    $region59: #{tpu_custom_call.1} parent=1 // pred_check_branch
      %575 = sbr.rel (0) target = $region61
    $region60: #{tpu_custom_call.1} parent=1 // pred_region
      %s577 = ssub.s32 256, 256
      %578 = vsyncadd [#allocation4], %s577
      %s579 = sshll.u32 [#allocation11], 4
      %s580 = int_to_ptr.vmem [resolvable:$true] %s579
      %585 = dma.vmem_to_hbm [thread:$0]  %s580, 256, %s9, [#allocation4], 128, 128, 8
    $region61: #{tpu_custom_call.1} parent=1 // pred_fallthru
      _
    // Predicated region
    $region62: #{tpu_custom_call.1} parent=1 // pred_check
      _
    $region63: #{tpu_custom_call.1} parent=1 // pred_check_branch
      %587 = sbr.rel (0) target = $region65
    $region64: #{tpu_custom_call.1} parent=1 // pred_region
      %s589 = ssub.s32 256, 256
      %590 = vsyncadd [#allocation13], %s589
      %s591 = sshll.u32 [#allocation12], 4
      %s592 = int_to_ptr.vmem [resolvable:$true] %s591
      %597 = dma.vmem_to_hbm [thread:$0]  %s592, 256, %s10, [#allocation13], 128, 128, 8
    $region65: #{tpu_custom_call.1} parent=1 // pred_fallthru
      _
    // Predicated region
    $region66: #{tpu_custom_call.1} parent=1 // pred_check
      _
    $region67: #{tpu_custom_call.1} parent=1 // pred_check_branch
      %599 = sbr.rel (0) target = $region69
    $region68: #{tpu_custom_call.1} parent=1 // pred_region
      %600 = dma.done [#allocation4], 256
    $region69: #{tpu_custom_call.1} parent=1 // pred_fallthru
      _
    // Predicated region
    $region70: #{tpu_custom_call.1} parent=1 // pred_check
      _
    $region71: #{tpu_custom_call.1} parent=1 // pred_check_branch
      %602 = sbr.rel (0) target = $region73
    $region72: #{tpu_custom_call.1} parent=1 // pred_region
      %603 = dma.done [#allocation13], 256
    $region73: #{tpu_custom_call.1} parent=1 // pred_fallthru
      _
    %604 = vsyncpa [#allocation3], 1
    %605 = vsyncpa [#allocation6], 1
    %606 = vsyncpa [#allocation9], 1
    %607 = vsyncpa [#allocation4], 1
    %608 = vsyncpa [#allocation13], 1

</llo_original>
